<compile_context>
chip_gen: v7x
topology: tpu7x:2x2x1
jax: 0.10.0
libtpu: 0.0.40
codegen_flags: <defaults>
</compile_context>

<pallas_src>
import functools

import jax
import jax.numpy as jnp
from jax.experimental import pallas as pl
from jax.experimental.pallas import tpu as pltpu


def _fused_kernel(x_ref, w_ref, b_ref, o_ref):
    # x_ref: (1, C_in, tm)   input pixels, pixel axis on lanes
    # w_ref: (C_out, C_in)   folded weight = bn_scale[:,None] * pointwise * dw[None,:]
    # b_ref: (C_out, 1)      folded BN bias
    # o_ref: (1, C_out, tm)  output pixels, pixel axis on lanes
    x = x_ref[0]                                              # (C_in, tm)
    y = jnp.dot(w_ref[...], x, preferred_element_type=jnp.float32)  # (C_out, tm) MXU
    y = y + b_ref[...]                                        # folded BN bias
    # exact (erf-based) GELU, matching torch.nn.GELU() default
    y = 0.5 * y * (1.0 + jax.lax.erf(y * (1.0 / jnp.sqrt(2.0))))
    o_ref[0] = y.astype(o_ref.dtype)


@functools.partial(jax.jit, static_argnames=("tm",))
def depthwise_conv_block(x_nchw, dw_weight, pw_weight, gamma, beta,
                         running_mean, running_var, eps=4e-5, tm=1024):
    """x_nchw: (N, C_in, H, W). Returns (N, C_out, H, W). Eval-mode BN semantics."""
    N, C_in, H, W = x_nchw.shape
    C_out = pw_weight.shape[0]
    HW = H * W

    # Pick pixel-tile size: full spatial extent if small, else a multiple of 128.
    if HW <= tm:
        tm_eff = HW
    else:
        tm_eff = max(128, (tm // 128) * 128)

    # Fold BN (eval) + depthwise scale into the pointwise weight, once, outside the kernel.
    scale = gamma / jnp.sqrt(running_var + eps)                       # (C_out,)
    bias = beta - running_mean * scale                                # (C_out,)
    pw = pw_weight.reshape(C_out, C_in).astype(jnp.float32)           # (C_out, C_in)
    dw = dw_weight.reshape(C_in).astype(jnp.float32)                  # (C_in,)
    w_folded = (pw * dw[None, :]) * scale[:, None]                    # (C_out, C_in)
    bias_col = bias.reshape(C_out, 1).astype(jnp.float32)             # (C_out, 1)

    x3 = x_nchw.reshape(N, C_in, HW)                                  # free reshape (NCHW)

    out3 = pl.pallas_call(
        _fused_kernel,
        out_shape=jax.ShapeDtypeStruct((N, C_out, HW), x_nchw.dtype),
        grid_spec=pltpu.PrefetchScalarGridSpec(
            num_scalar_prefetch=0,
            grid=(N, pl.cdiv(HW, tm_eff)),
            in_specs=[
                pl.BlockSpec((1, C_in, tm_eff), lambda n, j: (n, 0, j)),
                pl.BlockSpec((C_out, C_in), lambda n, j: (0, 0)),   # resident constant
                pl.BlockSpec((C_out, 1), lambda n, j: (0, 0)),      # resident constant
            ],
            out_specs=pl.BlockSpec((1, C_out, tm_eff), lambda n, j: (n, 0, j)),
        ),
        compiler_params=pltpu.CompilerParams(
            dimension_semantics=("parallel", "parallel")),
    )(x3, w_folded, bias_col)

    return out3.reshape(N, C_out, H, W)


def _reference(x_nchw, dw_weight, pw_weight, gamma, beta, running_mean,
               running_var, eps=4e-5):
    """Pure-JAX reference mirroring the PyTorch forward (eval-mode BN)."""
    N, C_in, H, W = x_nchw.shape
    C_out = pw_weight.shape[0]
    x = x_nchw * dw_weight.reshape(1, C_in, 1, 1)                        # depthwise 1x1
    x = jnp.einsum("nchw,oc->nohw", x, pw_weight.reshape(C_out, C_in))   # pointwise 1x1
    scale = (gamma / jnp.sqrt(running_var + eps)).reshape(1, C_out, 1, 1)
    bias = (beta - running_mean * gamma / jnp.sqrt(running_var + eps)).reshape(1, C_out, 1, 1)
    x = x * scale + bias
    return 0.5 * x * (1.0 + jax.lax.erf(x / jnp.sqrt(2.0)))              # exact GELU


if __name__ == "__main__":
    key = jax.random.PRNGKey(0)
    k_x, k_dw, k_pw, k_g, k_b, k_m, k_v = jax.random.split(key, 7)

    N, C_in, H, W = 2, 4, 16, 16
    C_out = 256  # nn.BatchNorm2d(256) in the module hard-codes 256 output channels.

    x = jax.random.normal(k_x, (N, C_in, H, W), dtype=jnp.float32)

    # Deterministic synthetic parameters (shapes match the PyTorch module).
    dw_weight = jax.random.normal(k_dw, (C_in, 1, 1, 1), dtype=jnp.float32) * 0.5
    pw_weight = jax.random.normal(k_pw, (C_out, C_in, 1, 1), dtype=jnp.float32) * 0.1
    gamma = 1.0 + 0.1 * jax.random.normal(k_g, (C_out,), dtype=jnp.float32)
    beta = 0.1 * jax.random.normal(k_b, (C_out,), dtype=jnp.float32)
    running_mean = 0.1 * jax.random.normal(k_m, (C_out,), dtype=jnp.float32)
    running_var = 1.0 + 0.1 * jax.random.uniform(k_v, (C_out,), dtype=jnp.float32)

    out = depthwise_conv_block(x, dw_weight, pw_weight, gamma, beta,
                               running_mean, running_var)
    out = jax.block_until_ready(out)

    ref = _reference(x, dw_weight, pw_weight, gamma, beta,
                     running_mean, running_var)
    assert out.shape == (N, C_out, H, W)
    assert jnp.allclose(out, ref, atol=1e-4, rtol=1e-4), "mismatch vs reference"

    print("KERNEL_OK")
</pallas_src>

<mosaic_0001>
module attributes {stable_mosaic.version = 11 : i64} {
  func.func @_fused_kernel(%arg0: i32, %arg1: i32, %arg2: memref<1x4x256xf32, #tpu.memory_space<vmem>>, %arg3: memref<256x4xf32, #tpu.memory_space<vmem>>, %arg4: memref<256x1xf32, #tpu.memory_space<vmem>>, %arg5: memref<1x256x256xf32, #tpu.memory_space<vmem>>) attributes {dimension_semantics = [#tpu.dimension_semantics<parallel>, #tpu.dimension_semantics<parallel>], iteration_bounds = array<i64: 2, 1>, scalar_prefetch = 0 : i64, scratch_operands = 0 : i64, tpu.core_type = #tpu.core_type<tc>, window_params = [{transform_indices = @transform_0, window_bounds = array<i64: 1, 4, 256>}, {pipeline_mode = #tpu.pipeline_mode<synchronous>, transform_indices = @transform_1, window_bounds = array<i64: 256, 4>}, {pipeline_mode = #tpu.pipeline_mode<synchronous>, transform_indices = @transform_2, window_bounds = array<i64: 256, 1>}, {transform_indices = @transform_3, window_bounds = array<i64: 1, 256, 256>}]} {
    %c0 = arith.constant 0 : index
    %c0_0 = arith.constant 0 : index
    %c0_1 = arith.constant 0 : index
    %0 = vector.load %arg2[%c0, %c0_0, %c0_1] : memref<1x4x256xf32, #tpu.memory_space<vmem>>, vector<1x4x256xf32>
    %1 = vector.shape_cast %0 : vector<1x4x256xf32> to vector<4x256xf32>
    %c0_2 = arith.constant 0 : index
    %c0_3 = arith.constant 0 : index
    %2 = vector.load %arg3[%c0_2, %c0_3] : memref<256x4xf32, #tpu.memory_space<vmem>>, vector<256x4xf32>
    %cst = arith.constant dense<0.000000e+00> : vector<256x256xf32>
    %3 = tpu.matmul %2, %1, %cst {dimension_numbers = #tpu.dot_dimension_numbers<[1], [0], [0], [1], [0, 0, 1, 1], [], []>} : vector<256x4xf32>, vector<4x256xf32>, vector<256x256xf32> -> vector<256x256xf32>
    %c0_4 = arith.constant 0 : index
    %c0_5 = arith.constant 0 : index
    %4 = vector.load %arg4[%c0_4, %c0_5] : memref<256x1xf32, #tpu.memory_space<vmem>>, vector<256x1xf32>
    %5 = vector.broadcast %4 : vector<256x1xf32> to vector<256x256xf32>
    %6 = arith.addf %3, %5 : vector<256x256xf32>
    %cst_6 = arith.constant 5.000000e-01 : f32
    %7 = vector.broadcast %cst_6 : f32 to vector<256x256xf32>
    %8 = arith.mulf %7, %6 : vector<256x256xf32>
    %cst_7 = arith.constant 2.000000e+00 : f32
    %9 = math.sqrt %cst_7 : f32
    %cst_8 = arith.constant 1.000000e+00 : f32
    %10 = arith.divf %cst_8, %9 : f32
    %11 = vector.broadcast %10 : f32 to vector<256x256xf32>
    %12 = arith.mulf %6, %11 : vector<256x256xf32>
    %13 = math.erf %12 : vector<256x256xf32>
    %cst_9 = arith.constant 1.000000e+00 : f32
    %14 = vector.broadcast %cst_9 : f32 to vector<256x256xf32>
    %15 = arith.addf %14, %13 : vector<256x256xf32>
    %16 = arith.mulf %8, %15 : vector<256x256xf32>
    %c0_10 = arith.constant 0 : index
    %c0_11 = arith.constant 0 : index
    %c0_12 = arith.constant 0 : index
    %17 = vector.load %arg5[%c0_10, %c0_11, %c0_12] : memref<1x256x256xf32, #tpu.memory_space<vmem>>, vector<1x256x256xf32>
    %18 = vector.shape_cast %17 : vector<1x256x256xf32> to vector<256x256xf32>
    %19 = vector.shape_cast %16 : vector<256x256xf32> to vector<1x256x256xf32>
    tpu.vector_store %arg5[%c0_10, %c0_11, %c0_12], %19 {strides = array<i32>} : memref<1x256x256xf32, #tpu.memory_space<vmem>>, vector<1x256x256xf32>,
    return
  }
  func.func @transform_0(%arg0: i32, %arg1: i32) -> (i32, i32, i32) {
    %c0_i32 = arith.constant 0 : i32
    %c0_i32_0 = arith.constant 0 : i32
    return %arg0, %c0_i32, %arg1 : i32, i32, i32
  }
  func.func @transform_1(%arg0: i32, %arg1: i32) -> (i32, i32) {
    %c0_i32 = arith.constant 0 : i32
    %c0_i32_0 = arith.constant 0 : i32
    %c0_i32_1 = arith.constant 0 : i32
    return %c0_i32, %c0_i32_0 : i32, i32
  }
  func.func @transform_2(%arg0: i32, %arg1: i32) -> (i32, i32) {
    %c0_i32 = arith.constant 0 : i32
    %c0_i32_0 = arith.constant 0 : i32
    %c0_i32_1 = arith.constant 0 : i32
    return %c0_i32, %c0_i32_0 : i32, i32
  }
  func.func @transform_3(%arg0: i32, %arg1: i32) -> (i32, i32, i32) {
    %c0_i32 = arith.constant 0 : i32
    %c0_i32_0 = arith.constant 0 : i32
    return %arg0, %c0_i32, %arg1 : i32, i32, i32
  }
}

</mosaic_0001>

<llo_original>
// kernel: depthwise_conv_block.1
$region0: #{depthwise_conv_block.1}
  #allocation0 [shape = 'u32[]', space=smem, size = 0x4, offset = 0x4, fixed_abs, tag = 'smem constant byte address 0x4 - core index']
  #allocation1 [shape = 'u32[144,128]{1,0:T(1,128)}', space=vmem, size = 0x12000, scoped, tag = 'internal scratch']
  %s0 = inlined_call_operand.vmem [shape: f32[2,4,256], index: 0, kind: input, shape index: {}]
  %s1 = inlined_call_operand.vmem [shape: f32[256,4], index: 1, kind: input, shape index: {}]
  %s2 = inlined_call_operand.vmem [shape: f32[256,1], index: 2, kind: input, shape index: {}]
  %s3 = inlined_call_operand.vmem [shape: f32[2,256,256], index: 3, kind: output, shape index: {}]
  %s4 = sld [smem:[#allocation0]]
  $region45: #{depthwise_conv_block.1} parent=0
    _
  %s6 = ssub.s32 1, %s4
  %s7 = scalar_select 0, %s6, %s4
  loop: start=0, step=1, limit=4
  $region2: #{depthwise_conv_block.1} parent=0 // loop_pre_header
    _
  $region3: #{depthwise_conv_block.1} parent=0 // loop_header
    %s9 = sphi 0, %s13
    %p10 = scmp.ge.s32.totalorder %s9, 4
    %s16 = sphi 0, %s28
    %s17 = sphi 0, %s24
    %s18 = sphi 0, %s16
    %s19 = sphi 0, %s17
    %s20 = sphi 0, %s18
    %s21 = sphi 0, %s19
    %s33 = sphi 0, %s35
    %s36 = sphi 0, %s33
    %s37 = sphi 0, %s36
    %s53 = sphi 0, %s37
    %s57 = sphi 0, %s57
    %s59 = sphi 0, %s57
    %s60 = sphi 0, %s59
    %s74 = sphi 0, %s60
    %s78 = sphi 0, %s78
    %s80 = sphi 0, %s78
    %s81 = sphi 0, %s80
    %s95 = sphi 0, %s81
    %s103 = sphi 0, %s105
    %s106 = sphi 0, %s103
    %s107 = sphi 0, %s106
    %s123 = sphi 0, %s107
  $region4: #{depthwise_conv_block.1} parent=0 // loop_header_branch
    %12 = sbr.rel (%p10) target = $region8
  $region5: #{depthwise_conv_block.1} parent=0 // loop_body
    %s14 = ssub.s32 %s9, 1
    %s15 = ssub.s32 %s9, 2
    %s22 = sadd.s32 1, %s17
    %p23 = scmp.ge.s32.totalorder %s22, 1
    %s24 = scalar_select %p23, 0, %s22
    %s25 = sadd.s32 1, %s16
    %s26 = scalar_select %p23, %s25, %s16
    %p27 = scmp.ge.s32.totalorder %s26, 2
    %s28 = scalar_select %p27, 0, %s26
    %s29 = ssub.s32 %s16, %s28
    %s30 = ssub.s32 %s17, %s24
    %s31 = sor.u32 %s29, %s30
    %p32 = scmp.eq.s32.totalorder %s31, 0
    %s34 = sadd.s32 %s33, 1
    %s35 = scalar_select %p32, %s33, %s34
    %p38 = pneg %p32
    %p39 = scmp.eq.s32.totalorder %s9, 1
    %p40 = por %p38, %p39
    %p41 = scmp.ne.s32.totalorder %s33, %s36
    %p42 = scmp.eq.s32.totalorder %s9, 0
    %p43 = por %p41, %p42
    %p44 = scmp.ne.s32.totalorder %s33, %s36
    %p45 = scmp.eq.s32.totalorder %s14, 1
    %p46 = por %p44, %p45
    %p47 = scmp.ne.s32.totalorder %s36, %s37
    %p48 = scmp.eq.s32.totalorder %s14, 0
    %p49 = por %p47, %p48
    %p50 = scmp.ne.s32.totalorder %s36, %s37
    %p51 = scmp.eq.s32.totalorder %s15, 1
    %p52 = por %p50, %p51
    %p54 = scmp.ne.s32.totalorder %s37, %s53
    %p55 = scmp.eq.s32.totalorder %s15, 0
    %p56 = por %p54, %p55
    %s58 = sadd.s32 %s57, 1
    %p61 = scmp.eq.s32.totalorder %s9, 1
    %p62 = scmp.ne.s32.totalorder %s57, %s59
    %p63 = scmp.eq.s32.totalorder %s9, 0
    %p64 = por %p62, %p63
    %p65 = scmp.ne.s32.totalorder %s57, %s59
    %p66 = scmp.eq.s32.totalorder %s14, 1
    %p67 = por %p65, %p66
    %p68 = scmp.ne.s32.totalorder %s59, %s60
    %p69 = scmp.eq.s32.totalorder %s14, 0
    %p70 = por %p68, %p69
    %p71 = scmp.ne.s32.totalorder %s59, %s60
    %p72 = scmp.eq.s32.totalorder %s15, 1
    %p73 = por %p71, %p72
    %p75 = scmp.ne.s32.totalorder %s60, %s74
    %p76 = scmp.eq.s32.totalorder %s15, 0
    %p77 = por %p75, %p76
    %s79 = sadd.s32 %s78, 1
    %p82 = scmp.eq.s32.totalorder %s9, 1
    %p83 = scmp.ne.s32.totalorder %s78, %s80
    %p84 = scmp.eq.s32.totalorder %s9, 0
    %p85 = por %p83, %p84
    %p86 = scmp.ne.s32.totalorder %s78, %s80
    %p87 = scmp.eq.s32.totalorder %s14, 1
    %p88 = por %p86, %p87
    %p89 = scmp.ne.s32.totalorder %s80, %s81
    %p90 = scmp.eq.s32.totalorder %s14, 0
    %p91 = por %p89, %p90
    %p92 = scmp.ne.s32.totalorder %s80, %s81
    %p93 = scmp.eq.s32.totalorder %s15, 1
    %p94 = por %p92, %p93
    %p96 = scmp.ne.s32.totalorder %s81, %s95
    %p97 = scmp.eq.s32.totalorder %s15, 0
    %p98 = por %p96, %p97
    %s99 = ssub.s32 %s16, %s28
    %s100 = ssub.s32 %s17, %s24
    %s101 = sor.u32 %s99, %s100
    %p102 = scmp.eq.s32.totalorder %s101, 0
    %s104 = sadd.s32 %s103, 1
    %s105 = scalar_select %p102, %s103, %s104
    %p108 = pneg %p102
    %p109 = scmp.eq.s32.totalorder %s9, 1
    %p110 = por %p108, %p109
    %p111 = scmp.ne.s32.totalorder %s103, %s106
    %p112 = scmp.eq.s32.totalorder %s9, 0
    %p113 = por %p111, %p112
    %p114 = scmp.ne.s32.totalorder %s103, %s106
    %p115 = scmp.eq.s32.totalorder %s14, 1
    %p116 = por %p114, %p115
    %p117 = scmp.ne.s32.totalorder %s106, %s107
    %p118 = scmp.eq.s32.totalorder %s14, 0
    %p119 = por %p117, %p118
    %p120 = scmp.ne.s32.totalorder %s106, %s107
    %p121 = scmp.eq.s32.totalorder %s15, 1
    %p122 = por %p120, %p121
    %p124 = scmp.ne.s32.totalorder %s107, %s123
    %p125 = scmp.eq.s32.totalorder %s15, 0
    %p126 = por %p124, %p125
    %p127 = scmp.le.s32.totalorder 1, %s9
    %p128 = scmp.lt.s32.totalorder %s9, 3
    %p129 = pnand %p127, %p128
    %p130 = pneg %p129
    // Predicated region
    $region9: #{depthwise_conv_block.1} parent=5 // pred_check
      _
    $region10: #{depthwise_conv_block.1} parent=5 // pred_check_branch
      %132 = sbr.rel (%p129) target = $region12
    $region11: #{depthwise_conv_block.1} parent=5 // pred_region
      %s133 = ssub.s32 %s9, 1
      // Predicated region
      $region13: #{depthwise_conv_block.1} parent=11 // pred_check
        %p134 = pneg %p70
      $region14: #{depthwise_conv_block.1} parent=11 // pred_check_branch
        %136 = sbr.rel (%p134) target = $region16
      $region15: #{depthwise_conv_block.1} parent=11 // pred_region
        _
      $region16: #{depthwise_conv_block.1} parent=11 // pred_fallthru
        _
      // Predicated region
      $region17: #{depthwise_conv_block.1} parent=11 // pred_check
        %p137 = pneg %p91
      $region18: #{depthwise_conv_block.1} parent=11 // pred_check_branch
        %139 = sbr.rel (%p137) target = $region20
      $region19: #{depthwise_conv_block.1} parent=11 // pred_region
        _
      $region20: #{depthwise_conv_block.1} parent=11 // pred_fallthru
        _
    $region12: #{depthwise_conv_block.1} parent=5 // pred_fallthru
      _
    %p140 = scmp.lt.s32.totalorder %s9, 2
    // Predicated region
    $region21: #{depthwise_conv_block.1} parent=5 // pred_check
      %p141 = pneg %p140
    $region22: #{depthwise_conv_block.1} parent=5 // pred_check_branch
      %143 = sbr.rel (%p141) target = $region24
    $region23: #{depthwise_conv_block.1} parent=5 // pred_region
      // Predicated region
      $region25: #{depthwise_conv_block.1} parent=23 // pred_check
        %p144 = pneg %p43
      $region26: #{depthwise_conv_block.1} parent=23 // pred_check_branch
        %146 = sbr.rel (%p144) target = $region28
      $region27: #{depthwise_conv_block.1} parent=23 // pred_region
        %s147 = smul.u32 2, %s17
        %p148 = scmp.lt.s32.totalorder %s16, 1
        %s149 = scalar_select %p148, %s16, 1
        %p150 = scmp.lt.s32.totalorder %s147, 1
        %s151 = scalar_select %p150, %s147, 1
        %s152 = smul.addr %s149, 2
        %s153 = sadd.s32 %s151, %s152
        %s154 = smul.addr %s153, 4
        %s155 = scalar_lea.vmem %s0, %s154
        %s156 = smul.u32 2, %s17
      $region28: #{depthwise_conv_block.1} parent=23 // pred_fallthru
        _
    $region24: #{depthwise_conv_block.1} parent=5 // pred_fallthru
      _
    %p157 = scmp.le.s32.totalorder 1, %s9
    %p158 = scmp.lt.s32.totalorder %s9, 3
    %p159 = pnand %p157, %p158
    %p160 = pneg %p159
    // Predicated region
    $region29: #{depthwise_conv_block.1} parent=5 // pred_check
      _
    $region30: #{depthwise_conv_block.1} parent=5 // pred_check_branch
      %162 = sbr.rel (%p159) target = $region32
    $region31: #{depthwise_conv_block.1} parent=5 // pred_region
      %s163 = ssub.s32 %s9, 1
      %s164 = smul.u32 2, %s19
      %p165 = scmp.lt.s32.totalorder %s18, 1
      %s166 = scalar_select %p165, %s18, 1
      %p167 = scmp.lt.s32.totalorder %s164, 1
      %s168 = scalar_select %p167, %s164, 1
      %s169 = smul.addr %s166, 2
      %s170 = sadd.s32 %s168, %s169
      %s171 = smul.addr %s170, 4
      %s172 = scalar_lea.vmem %s0, %s171
      %p173 = pneg %p49
      %p174 = pneg %p46
      %p175 = pneg %p70
      %p176 = pneg %p67
      %p177 = pneg %p91
      %p178 = pneg %p88
      %p179 = pneg %p119
      %p180 = pneg %p116
      %s181 = smul.u32 2, %s19
      %p182 = scmp.lt.s32.totalorder %s18, 1
      %s183 = scalar_select %p182, %s18, 1
      %p184 = scmp.lt.s32.totalorder %s181, 1
      %s185 = scalar_select %p184, %s181, 1
      %s186 = smul.addr %s183, 64
      %s187 = sadd.s32 %s185, %s186
      %s188 = smul.addr %s187, 8
      %s189 = scalar_lea.vmem %s3, %s188
      %s190 = smul.u32 2, %s19
      %p191 = scmp.lt.s32.totalorder %s18, 1
      %s192 = scalar_select %p191, %s18, 1
      %p193 = scmp.lt.s32.totalorder %s190, 1
      %s194 = scalar_select %p193, %s190, 1
      %s195 = smul.addr %s192, 2
      %s196 = sadd.s32 %s194, %s195
      %s197 = smul.addr %s196, 4
      %s198 = scalar_lea.vmem %s0, %s197
      %s199 = smul.u32 2, %s19
      %s200 = smul.u32 2, %s19
      %p201 = scmp.lt.s32.totalorder %s18, 1
      %s202 = scalar_select %p201, %s18, 1
      %p203 = scmp.lt.s32.totalorder %s200, 1
      %s204 = scalar_select %p203, %s200, 1
      %s205 = smul.addr %s202, 64
      %s206 = sadd.s32 %s204, %s205
      %s207 = smul.addr %s206, 8
      %s208 = scalar_lea.vmem %s3, %s207
      %s209 = smul.u32 2, %s19
      %v210 = vld [vmem:[%s198] sm:$0xff]
      %v211 = vld [vmem:[%s1] sm:$0xff]
      %v212 = vld [vmem:[%s1 + $0x8] sm:$0xff]
      %v213 = vld [vmem:[%s1 + $0x10] sm:$0xff]
      %v214 = vld [vmem:[%s1 + $0x18] sm:$0xff]
      %v215 = vld [vmem:[%s1 + $0x20] sm:$0xff]
      %v216 = vld [vmem:[%s1 + $0x28] sm:$0xff]
      %v217 = vld [vmem:[%s1 + $0x30] sm:$0xff]
      %v218 = vld [vmem:[%s1 + $0x38] sm:$0xff]
      %v219 = vld [vmem:[%s1 + $0x40] sm:$0xff]
      %v220 = vld [vmem:[%s1 + $0x48] sm:$0xff]
      %v221 = vld [vmem:[%s1 + $0x50] sm:$0xff]
      %v222 = vld [vmem:[%s1 + $0x58] sm:$0xff]
      %v223 = vld [vmem:[%s1 + $0x60] sm:$0xff]
      %v224 = vld [vmem:[%s1 + $0x68] sm:$0xff]
      %v225 = vld [vmem:[%s1 + $0x70] sm:$0xff]
      %v226 = vld [vmem:[%s1 + $0x78] sm:$0xff]
      %v227 = vld [vmem:[%s1 + $0x80] sm:$0xff]
      %v228 = vld [vmem:[%s1 + $0x88] sm:$0xff]
      %v229 = vld [vmem:[%s1 + $0x90] sm:$0xff]
      %v230 = vld [vmem:[%s1 + $0x98] sm:$0xff]
      %v231 = vld [vmem:[%s1 + $0xa0] sm:$0xff]
      %v232 = vld [vmem:[%s1 + $0xa8] sm:$0xff]
      %v233 = vld [vmem:[%s1 + $0xb0] sm:$0xff]
      %v234 = vld [vmem:[%s1 + $0xb8] sm:$0xff]
      %v235 = vld [vmem:[%s1 + $0xc0] sm:$0xff]
      %v236 = vld [vmem:[%s1 + $0xc8] sm:$0xff]
      %v237 = vld [vmem:[%s1 + $0xd0] sm:$0xff]
      %v238 = vld [vmem:[%s1 + $0xd8] sm:$0xff]
      %v239 = vld [vmem:[%s1 + $0xe0] sm:$0xff]
      %v240 = vld [vmem:[%s1 + $0xe8] sm:$0xff]
      %v241 = vld [vmem:[%s1 + $0xf0] sm:$0xff]
      %v242 = vld [vmem:[%s1 + $0xf8] sm:$0xff]
      %v243 = vld [vmem:[%s2] sm:$0xff]
      %v244 = vld [vmem:[%s2 + $0x8] sm:$0xff]
      %v245 = vld [vmem:[%s2 + $0x10] sm:$0xff]
      %v246 = vld [vmem:[%s2 + $0x18] sm:$0xff]
      %v247 = vld [vmem:[%s2 + $0x20] sm:$0xff]
      %v248 = vld [vmem:[%s2 + $0x28] sm:$0xff]
      %v249 = vld [vmem:[%s2 + $0x30] sm:$0xff]
      %v250 = vld [vmem:[%s2 + $0x38] sm:$0xff]
      %v251 = vld [vmem:[%s2 + $0x40] sm:$0xff]
      %v252 = vld [vmem:[%s2 + $0x48] sm:$0xff]
      %v253 = vld [vmem:[%s2 + $0x50] sm:$0xff]
      %v254 = vld [vmem:[%s2 + $0x58] sm:$0xff]
      %v255 = vld [vmem:[%s2 + $0x60] sm:$0xff]
      %v256 = vld [vmem:[%s2 + $0x68] sm:$0xff]
      %v257 = vld [vmem:[%s2 + $0x70] sm:$0xff]
      %v258 = vld [vmem:[%s2 + $0x78] sm:$0xff]
      %v259 = vld [vmem:[%s2 + $0x80] sm:$0xff]
      %v260 = vld [vmem:[%s2 + $0x88] sm:$0xff]
      %v261 = vld [vmem:[%s2 + $0x90] sm:$0xff]
      %v262 = vld [vmem:[%s2 + $0x98] sm:$0xff]
      %v263 = vld [vmem:[%s2 + $0xa0] sm:$0xff]
      %v264 = vld [vmem:[%s2 + $0xa8] sm:$0xff]
      %v265 = vld [vmem:[%s2 + $0xb0] sm:$0xff]
      %v266 = vld [vmem:[%s2 + $0xb8] sm:$0xff]
      %v267 = vld [vmem:[%s2 + $0xc0] sm:$0xff]
      %v268 = vld [vmem:[%s2 + $0xc8] sm:$0xff]
      %v269 = vld [vmem:[%s2 + $0xd0] sm:$0xff]
      %v270 = vld [vmem:[%s2 + $0xd8] sm:$0xff]
      %v271 = vld [vmem:[%s2 + $0xe0] sm:$0xff]
      %v272 = vld [vmem:[%s2 + $0xe8] sm:$0xff]
      %v273 = vld [vmem:[%s2 + $0xf0] sm:$0xff]
      %v274 = vld [vmem:[%s2 + $0xf8] sm:$0xff]
      %276 = vset.pattern.permute.xlu0 0
      %277 = vperm.xlu0 %276, %v243
      %v278 = vpop.permute.xlu0 %277
      %281 = vset.pattern.permute.xlu0 0
      %282 = vperm.xlu0 %281, %v244
      %v283 = vpop.permute.xlu0 %282
      %286 = vset.pattern.permute.xlu0 0
      %287 = vperm.xlu0 %286, %v245
      %v288 = vpop.permute.xlu0 %287
      %291 = vset.pattern.permute.xlu0 0
      %292 = vperm.xlu0 %291, %v246
      %v293 = vpop.permute.xlu0 %292
      %296 = vset.pattern.permute.xlu0 0
      %297 = vperm.xlu0 %296, %v247
      %v298 = vpop.permute.xlu0 %297
      %301 = vset.pattern.permute.xlu0 0
      %302 = vperm.xlu0 %301, %v248
      %v303 = vpop.permute.xlu0 %302
      %306 = vset.pattern.permute.xlu0 0
      %307 = vperm.xlu0 %306, %v249
      %v308 = vpop.permute.xlu0 %307
      %311 = vset.pattern.permute.xlu0 0
      %312 = vperm.xlu0 %311, %v250
      %v313 = vpop.permute.xlu0 %312
      %316 = vset.pattern.permute.xlu0 0
      %317 = vperm.xlu0 %316, %v251
      %v318 = vpop.permute.xlu0 %317
      %321 = vset.pattern.permute.xlu0 0
      %322 = vperm.xlu0 %321, %v252
      %v323 = vpop.permute.xlu0 %322
      %326 = vset.pattern.permute.xlu0 0
      %327 = vperm.xlu0 %326, %v253
      %v328 = vpop.permute.xlu0 %327
      %331 = vset.pattern.permute.xlu0 0
      %332 = vperm.xlu0 %331, %v254
      %v333 = vpop.permute.xlu0 %332
      %336 = vset.pattern.permute.xlu0 0
      %337 = vperm.xlu0 %336, %v255
      %v338 = vpop.permute.xlu0 %337
      %341 = vset.pattern.permute.xlu0 0
      %342 = vperm.xlu0 %341, %v256
      %v343 = vpop.permute.xlu0 %342
      %346 = vset.pattern.permute.xlu0 0
      %347 = vperm.xlu0 %346, %v257
      %v348 = vpop.permute.xlu0 %347
      %351 = vset.pattern.permute.xlu0 0
      %352 = vperm.xlu0 %351, %v258
      %v353 = vpop.permute.xlu0 %352
      %356 = vset.pattern.permute.xlu0 0
      %357 = vperm.xlu0 %356, %v259
      %v358 = vpop.permute.xlu0 %357
      %361 = vset.pattern.permute.xlu0 0
      %362 = vperm.xlu0 %361, %v260
      %v363 = vpop.permute.xlu0 %362
      %366 = vset.pattern.permute.xlu0 0
      %367 = vperm.xlu0 %366, %v261
      %v368 = vpop.permute.xlu0 %367
      %371 = vset.pattern.permute.xlu0 0
      %372 = vperm.xlu0 %371, %v262
      %v373 = vpop.permute.xlu0 %372
      %376 = vset.pattern.permute.xlu0 0
      %377 = vperm.xlu0 %376, %v263
      %v378 = vpop.permute.xlu0 %377
      %381 = vset.pattern.permute.xlu0 0
      %382 = vperm.xlu0 %381, %v264
      %v383 = vpop.permute.xlu0 %382
      %386 = vset.pattern.permute.xlu0 0
      %387 = vperm.xlu0 %386, %v265
      %v388 = vpop.permute.xlu0 %387
      %391 = vset.pattern.permute.xlu0 0
      %392 = vperm.xlu0 %391, %v266
      %v393 = vpop.permute.xlu0 %392
      %396 = vset.pattern.permute.xlu0 0
      %397 = vperm.xlu0 %396, %v267
      %v398 = vpop.permute.xlu0 %397
      %401 = vset.pattern.permute.xlu0 0
      %402 = vperm.xlu0 %401, %v268
      %v403 = vpop.permute.xlu0 %402
      %406 = vset.pattern.permute.xlu0 0
      %407 = vperm.xlu0 %406, %v269
      %v408 = vpop.permute.xlu0 %407
      %411 = vset.pattern.permute.xlu0 0
      %412 = vperm.xlu0 %411, %v270
      %v413 = vpop.permute.xlu0 %412
      %416 = vset.pattern.permute.xlu0 0
      %417 = vperm.xlu0 %416, %v271
      %v418 = vpop.permute.xlu0 %417
      %421 = vset.pattern.permute.xlu0 0
      %422 = vperm.xlu0 %421, %v272
      %v423 = vpop.permute.xlu0 %422
      %426 = vset.pattern.permute.xlu0 0
      %427 = vperm.xlu0 %426, %v273
      %v428 = vpop.permute.xlu0 %427
      %431 = vset.pattern.permute.xlu0 0
      %432 = vperm.xlu0 %431, %v274
      %v433 = vpop.permute.xlu0 %432
      %v436 = vcombine.high %v210, %v210
      %vm437 = vcmask 31744
      %v439 = vsel %vm437, %v211, 0
      %v442 = vsel %vm437, %v212, 0
      %v445 = vsel %vm437, %v213, 0
      %v448 = vsel %vm437, %v214, 0
      %v451 = vsel %vm437, %v215, 0
      %v454 = vsel %vm437, %v216, 0
      %v457 = vsel %vm437, %v217, 0
      %v460 = vsel %vm437, %v218, 0
      %v463 = vsel %vm437, %v219, 0
      %v466 = vsel %vm437, %v220, 0
      %v469 = vsel %vm437, %v221, 0
      %v472 = vsel %vm437, %v222, 0
      %v475 = vsel %vm437, %v223, 0
      %v478 = vsel %vm437, %v224, 0
      %v481 = vsel %vm437, %v225, 0
      %v484 = vsel %vm437, %v226, 0
      %v487 = vsel %vm437, %v227, 0
      %v490 = vsel %vm437, %v228, 0
      %v493 = vsel %vm437, %v229, 0
      %v496 = vsel %vm437, %v230, 0
      %v499 = vsel %vm437, %v231, 0
      %v502 = vsel %vm437, %v232, 0
      %v505 = vsel %vm437, %v233, 0
      %v508 = vsel %vm437, %v234, 0
      %v511 = vsel %vm437, %v235, 0
      %v514 = vsel %vm437, %v236, 0
      %v517 = vsel %vm437, %v237, 0
      %v520 = vsel %vm437, %v238, 0
      %v523 = vsel %vm437, %v239, 0
      %v526 = vsel %vm437, %v240, 0
      %v529 = vsel %vm437, %v241, 0
      %v532 = vsel %vm437, %v242, 0
      %vm534 = vcmask 1043456
      %v535 = vsel %vm534, %v210, 0
      %v537 = vsel %vm534, %v436, 0
      %539 = vmatprep.subr.mxu0 %v537
      %540 = vmatpush1.msra.mxu0 %v535
      %541 = vmatprep.subr.mxu0 0.0
      %542 = vmatpush1.msra.mxu0 0.0
      %543 = vmatprep.subr.mxu0 0.0
      %544 = vmatpush1.msra.mxu0 0.0
      %545 = vmatprep.subr.mxu0 0.0
      %546 = vmatpush1.msra.mxu0 0.0
      %547 = vmatprep.subr.mxu0 0.0
      %548 = vmatpush1.msra.mxu0 0.0
      %549 = vmatprep.subr.mxu0 0.0
      %550 = vmatpush1.msra.mxu0 0.0
      %551 = vmatprep.subr.mxu0 0.0
      %552 = vmatpush1.msra.mxu0 0.0
      %553 = vmatprep.subr.mxu0 0.0
      %554 = vmatpush1.msra.mxu0 0.0
      %555 = vmatprep.subr.mxu0 0.0
      %556 = vmatpush1.msra.mxu0 0.0
      %557 = vmatprep.subr.mxu0 0.0
      %558 = vmatpush1.msra.mxu0 0.0
      %559 = vmatprep.subr.mxu0 0.0
      %560 = vmatpush1.msra.mxu0 0.0
      %561 = vmatprep.subr.mxu0 0.0
      %562 = vmatpush1.msra.mxu0 0.0
      %563 = vmatprep.subr.mxu0 0.0
      %564 = vmatpush1.msra.mxu0 0.0
      %565 = vmatprep.subr.mxu0 0.0
      %566 = vmatpush1.msra.mxu0 0.0
      %567 = vmatprep.subr.mxu0 0.0
      %568 = vmatpush1.msra.mxu0 0.0
      %569 = vmatprep.subr.mxu0 0.0
      %570 = vmatpush1.msra.mxu0 0.0
      %571 = vmatprep.subr.mxu0 0.0
      %572 = vmatpush1.msra.mxu0 0.0
      %573 = vmatprep.subr.mxu0 0.0
      %574 = vmatpush1.msra.mxu0 0.0
      %575 = vmatprep.subr.mxu0 0.0
      %576 = vmatpush1.msra.mxu0 0.0
      %577 = vmatprep.subr.mxu0 0.0
      %578 = vmatpush1.msra.mxu0 0.0
      %579 = vmatprep.subr.mxu0 0.0
      %580 = vmatpush1.msra.mxu0 0.0
      %581 = vmatprep.subr.mxu0 0.0
      %582 = vmatpush1.msra.mxu0 0.0
      %583 = vmatprep.subr.mxu0 0.0
      %584 = vmatpush1.msra.mxu0 0.0
      %585 = vmatprep.subr.mxu0 0.0
      %586 = vmatpush1.msra.mxu0 0.0
      %587 = vmatprep.subr.mxu0 0.0
      %588 = vmatpush1.msra.mxu0 0.0
      %589 = vmatprep.subr.mxu0 0.0
      %590 = vmatpush1.msra.mxu0 0.0
      %591 = vmatprep.subr.mxu0 0.0
      %592 = vmatpush1.msra.mxu0 0.0
      %593 = vmatprep.subr.mxu0 0.0
      %594 = vmatpush1.msra.mxu0 0.0
      %595 = vmatprep.subr.mxu0 0.0
      %596 = vmatpush1.msra.mxu0 0.0
      %597 = vmatprep.subr.mxu0 0.0
      %598 = vmatpush1.msra.mxu0 0.0
      %599 = vmatprep.subr.mxu0 0.0
      %600 = vmatpush1.msra.mxu0 0.0
      %601 = vmatprep.subr.mxu0 0.0
      %602 = vmatpush1.msra.mxu0 0.0
      %603 = vmatprep.mubr.f32.mxu0 0.0
      %604 = vmatmul.mubr.f32.gmra.mrb[0].mxu0 %v439
      %v605 = vpop.f32.mrb[0].mxu0
      %v606 = vadd.f32 %v278, %v605
      %v607 = vpop.f32.mrb[0].mxu0
      %v608 = vadd.f32 %v278, %v607
      %609 = vmatprep.mubr.f32.mxu0 0.0
      %610 = vmatmul.mubr.f32.gmra.mrb[0].mxu0 %v442
      %v611 = vpop.f32.mrb[0].mxu0
      %v612 = vadd.f32 %v283, %v611
      %v613 = vpop.f32.mrb[0].mxu0
      %v614 = vadd.f32 %v283, %v613
      %615 = vmatprep.mubr.f32.mxu0 0.0
      %616 = vmatmul.mubr.f32.gmra.mrb[0].mxu0 %v445
      %v617 = vpop.f32.mrb[0].mxu0
      %v618 = vadd.f32 %v288, %v617
      %v619 = vpop.f32.mrb[0].mxu0
      %v620 = vadd.f32 %v288, %v619
      %621 = vmatprep.mubr.f32.mxu0 0.0
      %622 = vmatmul.mubr.f32.gmra.mrb[0].mxu0 %v448
      %v623 = vpop.f32.mrb[0].mxu0
      %v624 = vadd.f32 %v293, %v623
      %v625 = vpop.f32.mrb[0].mxu0
      %v626 = vadd.f32 %v293, %v625
      %627 = vmatprep.mubr.f32.mxu0 0.0
      %628 = vmatmul.mubr.f32.gmra.mrb[0].mxu0 %v451
      %v629 = vpop.f32.mrb[0].mxu0
      %v630 = vadd.f32 %v298, %v629
      %v631 = vpop.f32.mrb[0].mxu0
      %v632 = vadd.f32 %v298, %v631
      %633 = vmatprep.mubr.f32.mxu0 0.0
      %634 = vmatmul.mubr.f32.gmra.mrb[0].mxu0 %v454
      %v635 = vpop.f32.mrb[0].mxu0
      %v636 = vadd.f32 %v303, %v635
      %v637 = vpop.f32.mrb[0].mxu0
      %v638 = vadd.f32 %v303, %v637
      %639 = vmatprep.mubr.f32.mxu0 0.0
      %640 = vmatmul.mubr.f32.gmra.mrb[0].mxu0 %v457
      %v641 = vpop.f32.mrb[0].mxu0
      %v642 = vadd.f32 %v308, %v641
      %v643 = vpop.f32.mrb[0].mxu0
      %v644 = vadd.f32 %v308, %v643
      %645 = vmatprep.mubr.f32.mxu0 0.0
      %646 = vmatmul.mubr.f32.gmra.mrb[0].mxu0 %v460
      %v647 = vpop.f32.mrb[0].mxu0
      %v648 = vadd.f32 %v313, %v647
      %v649 = vpop.f32.mrb[0].mxu0
      %v650 = vadd.f32 %v313, %v649
      %651 = vmatprep.mubr.f32.mxu0 0.0
      %652 = vmatmul.mubr.f32.gmra.mrb[0].mxu0 %v463
      %v653 = vpop.f32.mrb[0].mxu0
      %v654 = vadd.f32 %v318, %v653
      %v655 = vpop.f32.mrb[0].mxu0
      %v656 = vadd.f32 %v318, %v655
      %657 = vmatprep.mubr.f32.mxu0 0.0
      %658 = vmatmul.mubr.f32.gmra.mrb[0].mxu0 %v466
      %v659 = vpop.f32.mrb[0].mxu0
      %v660 = vadd.f32 %v323, %v659
      %v661 = vpop.f32.mrb[0].mxu0
      %v662 = vadd.f32 %v323, %v661
      %663 = vmatprep.mubr.f32.mxu0 0.0
      %664 = vmatmul.mubr.f32.gmra.mrb[0].mxu0 %v469
      %v665 = vpop.f32.mrb[0].mxu0
      %v666 = vadd.f32 %v328, %v665
      %v667 = vpop.f32.mrb[0].mxu0
      %v668 = vadd.f32 %v328, %v667
      %669 = vmatprep.mubr.f32.mxu0 0.0
      %670 = vmatmul.mubr.f32.gmra.mrb[0].mxu0 %v472
      %v671 = vpop.f32.mrb[0].mxu0
      %v672 = vadd.f32 %v333, %v671
      %v673 = vpop.f32.mrb[0].mxu0
      %v674 = vadd.f32 %v333, %v673
      %675 = vmatprep.mubr.f32.mxu0 0.0
      %676 = vmatmul.mubr.f32.gmra.mrb[0].mxu0 %v475
      %v677 = vpop.f32.mrb[0].mxu0
      %v678 = vadd.f32 %v338, %v677
      %v679 = vpop.f32.mrb[0].mxu0
      %v680 = vadd.f32 %v338, %v679
      %681 = vmatprep.mubr.f32.mxu0 0.0
      %682 = vmatmul.mubr.f32.gmra.mrb[0].mxu0 %v478
      %v683 = vpop.f32.mrb[0].mxu0
      %v684 = vadd.f32 %v343, %v683
      %v685 = vpop.f32.mrb[0].mxu0
      %v686 = vadd.f32 %v343, %v685
      %687 = vmatprep.mubr.f32.mxu0 0.0
      %688 = vmatmul.mubr.f32.gmra.mrb[0].mxu0 %v481
      %v689 = vpop.f32.mrb[0].mxu0
      %v690 = vadd.f32 %v348, %v689
      %v691 = vpop.f32.mrb[0].mxu0
      %v692 = vadd.f32 %v348, %v691
      %693 = vmatprep.mubr.f32.mxu0 0.0
      %694 = vmatmul.mubr.f32.gmra.mrb[0].mxu0 %v484
      %v695 = vpop.f32.mrb[0].mxu0
      %v696 = vadd.f32 %v353, %v695
      %v697 = vpop.f32.mrb[0].mxu0
      %v698 = vadd.f32 %v353, %v697
      %699 = vmatprep.mubr.f32.mxu0 0.0
      %700 = vmatmul.mubr.f32.gmra.mrb[0].mxu0 %v487
      %v701 = vpop.f32.mrb[0].mxu0
      %v702 = vadd.f32 %v358, %v701
      %v703 = vpop.f32.mrb[0].mxu0
      %v704 = vadd.f32 %v358, %v703
      %705 = vmatprep.mubr.f32.mxu0 0.0
      %706 = vmatmul.mubr.f32.gmra.mrb[0].mxu0 %v490
      %v707 = vpop.f32.mrb[0].mxu0
      %v708 = vadd.f32 %v363, %v707
      %v709 = vpop.f32.mrb[0].mxu0
      %v710 = vadd.f32 %v363, %v709
      %711 = vmatprep.mubr.f32.mxu0 0.0
      %712 = vmatmul.mubr.f32.gmra.mrb[0].mxu0 %v493
      %v713 = vpop.f32.mrb[0].mxu0
      %v714 = vadd.f32 %v368, %v713
      %v715 = vpop.f32.mrb[0].mxu0
      %v716 = vadd.f32 %v368, %v715
      %717 = vmatprep.mubr.f32.mxu0 0.0
      %718 = vmatmul.mubr.f32.gmra.mrb[0].mxu0 %v496
      %v719 = vpop.f32.mrb[0].mxu0
      %v720 = vadd.f32 %v373, %v719
      %v721 = vpop.f32.mrb[0].mxu0
      %v722 = vadd.f32 %v373, %v721
      %723 = vmatprep.mubr.f32.mxu0 0.0
      %724 = vmatmul.mubr.f32.gmra.mrb[0].mxu0 %v499
      %v725 = vpop.f32.mrb[0].mxu0
      %v726 = vadd.f32 %v378, %v725
      %v727 = vpop.f32.mrb[0].mxu0
      %v728 = vadd.f32 %v378, %v727
      %729 = vmatprep.mubr.f32.mxu0 0.0
      %730 = vmatmul.mubr.f32.gmra.mrb[0].mxu0 %v502
      %v731 = vpop.f32.mrb[0].mxu0
      %v732 = vadd.f32 %v383, %v731
      %v733 = vpop.f32.mrb[0].mxu0
      %v734 = vadd.f32 %v383, %v733
      %735 = vmatprep.mubr.f32.mxu0 0.0
      %736 = vmatmul.mubr.f32.gmra.mrb[0].mxu0 %v505
      %v737 = vpop.f32.mrb[0].mxu0
      %v738 = vadd.f32 %v388, %v737
      %v739 = vpop.f32.mrb[0].mxu0
      %v740 = vadd.f32 %v388, %v739
      %741 = vmatprep.mubr.f32.mxu0 0.0
      %742 = vmatmul.mubr.f32.gmra.mrb[0].mxu0 %v508
      %v743 = vpop.f32.mrb[0].mxu0
      %v744 = vadd.f32 %v393, %v743
      %v745 = vpop.f32.mrb[0].mxu0
      %v746 = vadd.f32 %v393, %v745
      %747 = vmatprep.mubr.f32.mxu0 0.0
      %748 = vmatmul.mubr.f32.gmra.mrb[0].mxu0 %v511
      %v749 = vpop.f32.mrb[0].mxu0
      %v750 = vadd.f32 %v398, %v749
      %v751 = vpop.f32.mrb[0].mxu0
      %v752 = vadd.f32 %v398, %v751
      %753 = vmatprep.mubr.f32.mxu0 0.0
      %754 = vmatmul.mubr.f32.gmra.mrb[0].mxu0 %v514
      %v755 = vpop.f32.mrb[0].mxu0
      %v756 = vadd.f32 %v403, %v755
      %v757 = vpop.f32.mrb[0].mxu0
      %v758 = vadd.f32 %v403, %v757
      %759 = vmatprep.mubr.f32.mxu0 0.0
      %760 = vmatmul.mubr.f32.gmra.mrb[0].mxu0 %v517
      %v761 = vpop.f32.mrb[0].mxu0
      %v762 = vadd.f32 %v408, %v761
      %v763 = vpop.f32.mrb[0].mxu0
      %v764 = vadd.f32 %v408, %v763
      %765 = vmatprep.mubr.f32.mxu0 0.0
      %766 = vmatmul.mubr.f32.gmra.mrb[0].mxu0 %v520
      %v767 = vpop.f32.mrb[0].mxu0
      %v768 = vadd.f32 %v413, %v767
      %v769 = vpop.f32.mrb[0].mxu0
      %v770 = vadd.f32 %v413, %v769
      %771 = vmatprep.mubr.f32.mxu0 0.0
      %772 = vmatmul.mubr.f32.gmra.mrb[0].mxu0 %v523
      %v773 = vpop.f32.mrb[0].mxu0
      %v774 = vadd.f32 %v418, %v773
      %v775 = vpop.f32.mrb[0].mxu0
      %v776 = vadd.f32 %v418, %v775
      %777 = vmatprep.mubr.f32.mxu0 0.0
      %778 = vmatmul.mubr.f32.gmra.mrb[0].mxu0 %v526
      %v779 = vpop.f32.mrb[0].mxu0
      %v780 = vadd.f32 %v423, %v779
      %v781 = vpop.f32.mrb[0].mxu0
      %v782 = vadd.f32 %v423, %v781
      %783 = vmatprep.mubr.f32.mxu0 0.0
      %784 = vmatmul.mubr.f32.gmra.mrb[0].mxu0 %v529
      %v785 = vpop.f32.mrb[0].mxu0
      %v786 = vadd.f32 %v428, %v785
      %v787 = vpop.f32.mrb[0].mxu0
      %v788 = vadd.f32 %v428, %v787
      %789 = vmatprep.mubr.f32.mxu0 0.0
      %790 = vmatmul.mubr.f32.gmra.mrb[0].mxu0 %v532
      %v791 = vpop.f32.mrb[0].mxu0
      %v792 = vadd.f32 %v433, %v791
      %v793 = vpop.f32.mrb[0].mxu0
      %v794 = vadd.f32 %v433, %v793
      %795 = vdwg.mxu0
      %v796 = vmul.f32 %v606, 0.5
      %v797 = vmul.f32 %v608, 0.5
      %v798 = vmul.f32 %v612, 0.5
      %v799 = vmul.f32 %v614, 0.5
      %v800 = vmul.f32 %v618, 0.5
      %v801 = vmul.f32 %v620, 0.5
      %v802 = vmul.f32 %v624, 0.5
      %v803 = vmul.f32 %v626, 0.5
      %v804 = vmul.f32 %v630, 0.5
      %v805 = vmul.f32 %v632, 0.5
      %v806 = vmul.f32 %v636, 0.5
      %v807 = vmul.f32 %v638, 0.5
      %v808 = vmul.f32 %v642, 0.5
      %v809 = vmul.f32 %v644, 0.5
      %v810 = vmul.f32 %v648, 0.5
      %v811 = vmul.f32 %v650, 0.5
      %v812 = vmul.f32 %v654, 0.5
      %v813 = vmul.f32 %v656, 0.5
      %v814 = vmul.f32 %v660, 0.5
      %v815 = vmul.f32 %v662, 0.5
      %v816 = vmul.f32 %v666, 0.5
      %v817 = vmul.f32 %v668, 0.5
      %v818 = vmul.f32 %v672, 0.5
      %v819 = vmul.f32 %v674, 0.5
      %v820 = vmul.f32 %v678, 0.5
      %v821 = vmul.f32 %v680, 0.5
      %v822 = vmul.f32 %v684, 0.5
      %v823 = vmul.f32 %v686, 0.5
      %v824 = vmul.f32 %v690, 0.5
      %v825 = vmul.f32 %v692, 0.5
      %v826 = vmul.f32 %v696, 0.5
      %v827 = vmul.f32 %v698, 0.5
      %v828 = vmul.f32 %v702, 0.5
      %v829 = vmul.f32 %v704, 0.5
      %v830 = vmul.f32 %v708, 0.5
      %v831 = vmul.f32 %v710, 0.5
      %v832 = vmul.f32 %v714, 0.5
      %v833 = vmul.f32 %v716, 0.5
      %v834 = vmul.f32 %v720, 0.5
      %v835 = vmul.f32 %v722, 0.5
      %v836 = vmul.f32 %v726, 0.5
      %v837 = vmul.f32 %v728, 0.5
      %v838 = vmul.f32 %v732, 0.5
      %v839 = vmul.f32 %v734, 0.5
      %v840 = vmul.f32 %v738, 0.5
      %v841 = vmul.f32 %v740, 0.5
      %v842 = vmul.f32 %v744, 0.5
      %v843 = vmul.f32 %v746, 0.5
      %v844 = vmul.f32 %v750, 0.5
      %v845 = vmul.f32 %v752, 0.5
      %v846 = vmul.f32 %v756, 0.5
      %v847 = vmul.f32 %v758, 0.5
      %v848 = vmul.f32 %v762, 0.5
      %v849 = vmul.f32 %v764, 0.5
      %v850 = vmul.f32 %v768, 0.5
      %v851 = vmul.f32 %v770, 0.5
      %v852 = vmul.f32 %v774, 0.5
      %v853 = vmul.f32 %v776, 0.5
      %v854 = vmul.f32 %v780, 0.5
      %v855 = vmul.f32 %v782, 0.5
      %v856 = vmul.f32 %v786, 0.5
      %v857 = vmul.f32 %v788, 0.5
      %v858 = vmul.f32 %v792, 0.5
      %v859 = vmul.f32 %v794, 0.5
      %v860 = vmul.f32 %v606, 0.70710677
      %v861 = vmul.f32 %v608, 0.70710677
      %v862 = vmul.f32 %v612, 0.70710677
      %v863 = vmul.f32 %v614, 0.70710677
      %v864 = vmul.f32 %v618, 0.70710677
      %v865 = vmul.f32 %v620, 0.70710677
      %v866 = vmul.f32 %v624, 0.70710677
      %v867 = vmul.f32 %v626, 0.70710677
      %v868 = vmul.f32 %v630, 0.70710677
      %v869 = vmul.f32 %v632, 0.70710677
      %v870 = vmul.f32 %v636, 0.70710677
      %v871 = vmul.f32 %v638, 0.70710677
      %v872 = vmul.f32 %v642, 0.70710677
      %v873 = vmul.f32 %v644, 0.70710677
      %v874 = vmul.f32 %v648, 0.70710677
      %v875 = vmul.f32 %v650, 0.70710677
      %v876 = vmul.f32 %v654, 0.70710677
      %v877 = vmul.f32 %v656, 0.70710677
      %v878 = vmul.f32 %v660, 0.70710677
      %v879 = vmul.f32 %v662, 0.70710677
      %v880 = vmul.f32 %v666, 0.70710677
      %v881 = vmul.f32 %v668, 0.70710677
      %v882 = vmul.f32 %v672, 0.70710677
      %v883 = vmul.f32 %v674, 0.70710677
      %v884 = vmul.f32 %v678, 0.70710677
      %v885 = vmul.f32 %v680, 0.70710677
      %v886 = vmul.f32 %v684, 0.70710677
      %v887 = vmul.f32 %v686, 0.70710677
      %v888 = vmul.f32 %v690, 0.70710677
      %v889 = vmul.f32 %v692, 0.70710677
      %v890 = vmul.f32 %v696, 0.70710677
      %v891 = vmul.f32 %v698, 0.70710677
      %v892 = vmul.f32 %v702, 0.70710677
      %v893 = vmul.f32 %v704, 0.70710677
      %v894 = vmul.f32 %v708, 0.70710677
      %v895 = vmul.f32 %v710, 0.70710677
      %v896 = vmul.f32 %v714, 0.70710677
      %v897 = vmul.f32 %v716, 0.70710677
      %v898 = vmul.f32 %v720, 0.70710677
      %v899 = vmul.f32 %v722, 0.70710677
      %v900 = vmul.f32 %v726, 0.70710677
      %v901 = vmul.f32 %v728, 0.70710677
      %v902 = vmul.f32 %v732, 0.70710677
      %v903 = vmul.f32 %v734, 0.70710677
      %v904 = vmul.f32 %v738, 0.70710677
      %v905 = vmul.f32 %v740, 0.70710677
      %v906 = vmul.f32 %v744, 0.70710677
      %v907 = vmul.f32 %v746, 0.70710677
      %v908 = vmul.f32 %v750, 0.70710677
      %v909 = vmul.f32 %v752, 0.70710677
      %v910 = vmul.f32 %v756, 0.70710677
      %v911 = vmul.f32 %v758, 0.70710677
      %v912 = vmul.f32 %v762, 0.70710677
      %v913 = vmul.f32 %v764, 0.70710677
      %v914 = vmul.f32 %v768, 0.70710677
      %v915 = vmul.f32 %v770, 0.70710677
      %v916 = vmul.f32 %v774, 0.70710677
      %v917 = vmul.f32 %v776, 0.70710677
      %v918 = vmul.f32 %v780, 0.70710677
      %v919 = vmul.f32 %v782, 0.70710677
      %v920 = vmul.f32 %v786, 0.70710677
      %v921 = vmul.f32 %v788, 0.70710677
      %v922 = vmul.f32 %v792, 0.70710677
      %v923 = vmul.f32 %v794, 0.70710677
      %v924 = verf.f32.pop %v860
      %v925 = verf.f32.pop %v861
      %v926 = verf.f32.pop %v862
      %v927 = verf.f32.pop %v863
      %v928 = verf.f32.pop %v864
      %v929 = verf.f32.pop %v865
      %v930 = verf.f32.pop %v866
      %v931 = verf.f32.pop %v867
      %v932 = verf.f32.pop %v868
      %v933 = verf.f32.pop %v869
      %v934 = verf.f32.pop %v870
      %v935 = verf.f32.pop %v871
      %v936 = verf.f32.pop %v872
      %v937 = verf.f32.pop %v873
      %v938 = verf.f32.pop %v874
      %v939 = verf.f32.pop %v875
      %v940 = verf.f32.pop %v876
      %v941 = verf.f32.pop %v877
      %v942 = verf.f32.pop %v878
      %v943 = verf.f32.pop %v879
      %v944 = verf.f32.pop %v880
      %v945 = verf.f32.pop %v881
      %v946 = verf.f32.pop %v882
      %v947 = verf.f32.pop %v883
      %v948 = verf.f32.pop %v884
      %v949 = verf.f32.pop %v885
      %v950 = verf.f32.pop %v886
      %v951 = verf.f32.pop %v887
      %v952 = verf.f32.pop %v888
      %v953 = verf.f32.pop %v889
      %v954 = verf.f32.pop %v890
      %v955 = verf.f32.pop %v891
      %v956 = verf.f32.pop %v892
      %v957 = verf.f32.pop %v893
      %v958 = verf.f32.pop %v894
      %v959 = verf.f32.pop %v895
      %v960 = verf.f32.pop %v896
      %v961 = verf.f32.pop %v897
      %v962 = verf.f32.pop %v898
      %v963 = verf.f32.pop %v899
      %v964 = verf.f32.pop %v900
      %v965 = verf.f32.pop %v901
      %v966 = verf.f32.pop %v902
      %v967 = verf.f32.pop %v903
      %v968 = verf.f32.pop %v904
      %v969 = verf.f32.pop %v905
      %v970 = verf.f32.pop %v906
      %v971 = verf.f32.pop %v907
      %v972 = verf.f32.pop %v908
      %v973 = verf.f32.pop %v909
      %v974 = verf.f32.pop %v910
      %v975 = verf.f32.pop %v911
      %v976 = verf.f32.pop %v912
      %v977 = verf.f32.pop %v913
      %v978 = verf.f32.pop %v914
      %v979 = verf.f32.pop %v915
      %v980 = verf.f32.pop %v916
      %v981 = verf.f32.pop %v917
      %v982 = verf.f32.pop %v918
      %v983 = verf.f32.pop %v919
      %v984 = verf.f32.pop %v920
      %v985 = verf.f32.pop %v921
      %v986 = verf.f32.pop %v922
      %v987 = verf.f32.pop %v923
      %v988 = vadd.f32 %v924, 1.0
      %v989 = vadd.f32 %v925, 1.0
      %v990 = vadd.f32 %v926, 1.0
      %v991 = vadd.f32 %v927, 1.0
      %v992 = vadd.f32 %v928, 1.0
      %v993 = vadd.f32 %v929, 1.0
      %v994 = vadd.f32 %v930, 1.0
      %v995 = vadd.f32 %v931, 1.0
      %v996 = vadd.f32 %v932, 1.0
      %v997 = vadd.f32 %v933, 1.0
      %v998 = vadd.f32 %v934, 1.0
      %v999 = vadd.f32 %v935, 1.0
      %v1000 = vadd.f32 %v936, 1.0
      %v1001 = vadd.f32 %v937, 1.0
      %v1002 = vadd.f32 %v938, 1.0
      %v1003 = vadd.f32 %v939, 1.0
      %v1004 = vadd.f32 %v940, 1.0
      %v1005 = vadd.f32 %v941, 1.0
      %v1006 = vadd.f32 %v942, 1.0
      %v1007 = vadd.f32 %v943, 1.0
      %v1008 = vadd.f32 %v944, 1.0
      %v1009 = vadd.f32 %v945, 1.0
      %v1010 = vadd.f32 %v946, 1.0
      %v1011 = vadd.f32 %v947, 1.0
      %v1012 = vadd.f32 %v948, 1.0
      %v1013 = vadd.f32 %v949, 1.0
      %v1014 = vadd.f32 %v950, 1.0
      %v1015 = vadd.f32 %v951, 1.0
      %v1016 = vadd.f32 %v952, 1.0
      %v1017 = vadd.f32 %v953, 1.0
      %v1018 = vadd.f32 %v954, 1.0
      %v1019 = vadd.f32 %v955, 1.0
      %v1020 = vadd.f32 %v956, 1.0
      %v1021 = vadd.f32 %v957, 1.0
      %v1022 = vadd.f32 %v958, 1.0
      %v1023 = vadd.f32 %v959, 1.0
      %v1024 = vadd.f32 %v960, 1.0
      %v1025 = vadd.f32 %v961, 1.0
      %v1026 = vadd.f32 %v962, 1.0
      %v1027 = vadd.f32 %v963, 1.0
      %v1028 = vadd.f32 %v964, 1.0
      %v1029 = vadd.f32 %v965, 1.0
      %v1030 = vadd.f32 %v966, 1.0
      %v1031 = vadd.f32 %v967, 1.0
      %v1032 = vadd.f32 %v968, 1.0
      %v1033 = vadd.f32 %v969, 1.0
      %v1034 = vadd.f32 %v970, 1.0
      %v1035 = vadd.f32 %v971, 1.0
      %v1036 = vadd.f32 %v972, 1.0
      %v1037 = vadd.f32 %v973, 1.0
      %v1038 = vadd.f32 %v974, 1.0
      %v1039 = vadd.f32 %v975, 1.0
      %v1040 = vadd.f32 %v976, 1.0
      %v1041 = vadd.f32 %v977, 1.0
      %v1042 = vadd.f32 %v978, 1.0
      %v1043 = vadd.f32 %v979, 1.0
      %v1044 = vadd.f32 %v980, 1.0
      %v1045 = vadd.f32 %v981, 1.0
      %v1046 = vadd.f32 %v982, 1.0
      %v1047 = vadd.f32 %v983, 1.0
      %v1048 = vadd.f32 %v984, 1.0
      %v1049 = vadd.f32 %v985, 1.0
      %v1050 = vadd.f32 %v986, 1.0
      %v1051 = vadd.f32 %v987, 1.0
      %v1052 = vmul.f32 %v796, %v988
      %v1053 = vmul.f32 %v797, %v989
      %v1054 = vmul.f32 %v798, %v990
      %v1055 = vmul.f32 %v799, %v991
      %v1056 = vmul.f32 %v800, %v992
      %v1057 = vmul.f32 %v801, %v993
      %v1058 = vmul.f32 %v802, %v994
      %v1059 = vmul.f32 %v803, %v995
      %v1060 = vmul.f32 %v804, %v996
      %v1061 = vmul.f32 %v805, %v997
      %v1062 = vmul.f32 %v806, %v998
      %v1063 = vmul.f32 %v807, %v999
      %v1064 = vmul.f32 %v808, %v1000
      %v1065 = vmul.f32 %v809, %v1001
      %v1066 = vmul.f32 %v810, %v1002
      %v1067 = vmul.f32 %v811, %v1003
      %v1068 = vmul.f32 %v812, %v1004
      %v1069 = vmul.f32 %v813, %v1005
      %v1070 = vmul.f32 %v814, %v1006
      %v1071 = vmul.f32 %v815, %v1007
      %v1072 = vmul.f32 %v816, %v1008
      %v1073 = vmul.f32 %v817, %v1009
      %v1074 = vmul.f32 %v818, %v1010
      %v1075 = vmul.f32 %v819, %v1011
      %v1076 = vmul.f32 %v820, %v1012
      %v1077 = vmul.f32 %v821, %v1013
      %v1078 = vmul.f32 %v822, %v1014
      %v1079 = vmul.f32 %v823, %v1015
      %v1080 = vmul.f32 %v824, %v1016
      %v1081 = vmul.f32 %v825, %v1017
      %v1082 = vmul.f32 %v826, %v1018
      %v1083 = vmul.f32 %v827, %v1019
      %v1084 = vmul.f32 %v828, %v1020
      %v1085 = vmul.f32 %v829, %v1021
      %v1086 = vmul.f32 %v830, %v1022
      %v1087 = vmul.f32 %v831, %v1023
      %v1088 = vmul.f32 %v832, %v1024
      %v1089 = vmul.f32 %v833, %v1025
      %v1090 = vmul.f32 %v834, %v1026
      %v1091 = vmul.f32 %v835, %v1027
      %v1092 = vmul.f32 %v836, %v1028
      %v1093 = vmul.f32 %v837, %v1029
      %v1094 = vmul.f32 %v838, %v1030
      %v1095 = vmul.f32 %v839, %v1031
      %v1096 = vmul.f32 %v840, %v1032
      %v1097 = vmul.f32 %v841, %v1033
      %v1098 = vmul.f32 %v842, %v1034
      %v1099 = vmul.f32 %v843, %v1035
      %v1100 = vmul.f32 %v844, %v1036
      %v1101 = vmul.f32 %v845, %v1037
      %v1102 = vmul.f32 %v846, %v1038
      %v1103 = vmul.f32 %v847, %v1039
      %v1104 = vmul.f32 %v848, %v1040
      %v1105 = vmul.f32 %v849, %v1041
      %v1106 = vmul.f32 %v850, %v1042
      %v1107 = vmul.f32 %v851, %v1043
      %v1108 = vmul.f32 %v852, %v1044
      %v1109 = vmul.f32 %v853, %v1045
      %v1110 = vmul.f32 %v854, %v1046
      %v1111 = vmul.f32 %v855, %v1047
      %v1112 = vmul.f32 %v856, %v1048
      %v1113 = vmul.f32 %v857, %v1049
      %v1114 = vmul.f32 %v858, %v1050
      %v1115 = vmul.f32 %v859, %v1051
      %1116 = vst [vmem:[%s208] sm:$0xff] %v1052
      %1117 = vst [vmem:[%s208 + $0x8] sm:$0xff] %v1053
      %1118 = vst [vmem:[%s208 + $0x10] sm:$0xff] %v1054
      %1119 = vst [vmem:[%s208 + $0x18] sm:$0xff] %v1055
      %1120 = vst [vmem:[%s208 + $0x20] sm:$0xff] %v1056
      %1121 = vst [vmem:[%s208 + $0x28] sm:$0xff] %v1057
      %1122 = vst [vmem:[%s208 + $0x30] sm:$0xff] %v1058
      %1123 = vst [vmem:[%s208 + $0x38] sm:$0xff] %v1059
      %1124 = vst [vmem:[%s208 + $0x40] sm:$0xff] %v1060
      %1125 = vst [vmem:[%s208 + $0x48] sm:$0xff] %v1061
      %1126 = vst [vmem:[%s208 + $0x50] sm:$0xff] %v1062
      %1127 = vst [vmem:[%s208 + $0x58] sm:$0xff] %v1063
      %1128 = vst [vmem:[%s208 + $0x60] sm:$0xff] %v1064
      %1129 = vst [vmem:[%s208 + $0x68] sm:$0xff] %v1065
      %1130 = vst [vmem:[%s208 + $0x70] sm:$0xff] %v1066
      %1131 = vst [vmem:[%s208 + $0x78] sm:$0xff] %v1067
      %1132 = vst [vmem:[%s208 + $0x80] sm:$0xff] %v1068
      %1133 = vst [vmem:[%s208 + $0x88] sm:$0xff] %v1069
      %1134 = vst [vmem:[%s208 + $0x90] sm:$0xff] %v1070
      %1135 = vst [vmem:[%s208 + $0x98] sm:$0xff] %v1071
      %1136 = vst [vmem:[%s208 + $0xa0] sm:$0xff] %v1072
      %1137 = vst [vmem:[%s208 + $0xa8] sm:$0xff] %v1073
      %1138 = vst [vmem:[%s208 + $0xb0] sm:$0xff] %v1074
      %1139 = vst [vmem:[%s208 + $0xb8] sm:$0xff] %v1075
      %1140 = vst [vmem:[%s208 + $0xc0] sm:$0xff] %v1076
      %1141 = vst [vmem:[%s208 + $0xc8] sm:$0xff] %v1077
      %1142 = vst [vmem:[%s208 + $0xd0] sm:$0xff] %v1078
      %1143 = vst [vmem:[%s208 + $0xd8] sm:$0xff] %v1079
      %1144 = vst [vmem:[%s208 + $0xe0] sm:$0xff] %v1080
      %1145 = vst [vmem:[%s208 + $0xe8] sm:$0xff] %v1081
      %1146 = vst [vmem:[%s208 + $0xf0] sm:$0xff] %v1082
      %1147 = vst [vmem:[%s208 + $0xf8] sm:$0xff] %v1083
      %1148 = vst [vmem:[%s208 + $0x100] sm:$0xff] %v1084
      %1149 = vst [vmem:[%s208 + $0x108] sm:$0xff] %v1085
      %1150 = vst [vmem:[%s208 + $0x110] sm:$0xff] %v1086
      %1151 = vst [vmem:[%s208 + $0x118] sm:$0xff] %v1087
      %1152 = vst [vmem:[%s208 + $0x120] sm:$0xff] %v1088
      %1153 = vst [vmem:[%s208 + $0x128] sm:$0xff] %v1089
      %1154 = vst [vmem:[%s208 + $0x130] sm:$0xff] %v1090
      %1155 = vst [vmem:[%s208 + $0x138] sm:$0xff] %v1091
      %1156 = vst [vmem:[%s208 + $0x140] sm:$0xff] %v1092
      %1157 = vst [vmem:[%s208 + $0x148] sm:$0xff] %v1093
      %1158 = vst [vmem:[%s208 + $0x150] sm:$0xff] %v1094
      %1159 = vst [vmem:[%s208 + $0x158] sm:$0xff] %v1095
      %1160 = vst [vmem:[%s208 + $0x160] sm:$0xff] %v1096
      %1161 = vst [vmem:[%s208 + $0x168] sm:$0xff] %v1097
      %1162 = vst [vmem:[%s208 + $0x170] sm:$0xff] %v1098
      %1163 = vst [vmem:[%s208 + $0x178] sm:$0xff] %v1099
      %1164 = vst [vmem:[%s208 + $0x180] sm:$0xff] %v1100
      %1165 = vst [vmem:[%s208 + $0x188] sm:$0xff] %v1101
      %1166 = vst [vmem:[%s208 + $0x190] sm:$0xff] %v1102
      %1167 = vst [vmem:[%s208 + $0x198] sm:$0xff] %v1103
      %1168 = vst [vmem:[%s208 + $0x1a0] sm:$0xff] %v1104
      %1169 = vst [vmem:[%s208 + $0x1a8] sm:$0xff] %v1105
      %1170 = vst [vmem:[%s208 + $0x1b0] sm:$0xff] %v1106
      %1171 = vst [vmem:[%s208 + $0x1b8] sm:$0xff] %v1107
      %1172 = vst [vmem:[%s208 + $0x1c0] sm:$0xff] %v1108
      %1173 = vst [vmem:[%s208 + $0x1c8] sm:$0xff] %v1109
      %1174 = vst [vmem:[%s208 + $0x1d0] sm:$0xff] %v1110
      %1175 = vst [vmem:[%s208 + $0x1d8] sm:$0xff] %v1111
      %1176 = vst [vmem:[%s208 + $0x1e0] sm:$0xff] %v1112
      %1177 = vst [vmem:[%s208 + $0x1e8] sm:$0xff] %v1113
      %1178 = vst [vmem:[%s208 + $0x1f0] sm:$0xff] %v1114
      %1179 = vst [vmem:[%s208 + $0x1f8] sm:$0xff] %v1115
      %s1180 = smul.u32 2, %s19
      %p1181 = scmp.lt.s32.totalorder %s18, 1
      %s1182 = scalar_select %p1181, %s18, 1
      %p1183 = scmp.lt.s32.totalorder %s1180, 1
      %s1184 = scalar_select %p1183, %s1180, 1
      %s1185 = smul.addr %s1182, 64
      %s1186 = sadd.s32 %s1184, %s1185
      %s1187 = smul.addr %s1186, 8
      %s1188 = scalar_lea.vmem %s3, %s1187
      // Predicated region
      $region33: #{depthwise_conv_block.1} parent=31 // pred_check
        %p1189 = pneg %p116
      $region34: #{depthwise_conv_block.1} parent=31 // pred_check_branch
        %1191 = sbr.rel (%p1189) target = $region36
      $region35: #{depthwise_conv_block.1} parent=31 // pred_region
        %s1192 = smul.u32 2, %s19
      $region36: #{depthwise_conv_block.1} parent=31 // pred_fallthru
        _
    $region32: #{depthwise_conv_block.1} parent=5 // pred_fallthru
      _
    %p1193 = scmp.le.s32.totalorder 2, %s9
    // Predicated region
    $region37: #{depthwise_conv_block.1} parent=5 // pred_check
      %p1194 = pneg %p1193
    $region38: #{depthwise_conv_block.1} parent=5 // pred_check_branch
      %1196 = sbr.rel (%p1194) target = $region40
    $region39: #{depthwise_conv_block.1} parent=5 // pred_region
      %s1197 = ssub.s32 %s9, 2
      // Predicated region
      $region41: #{depthwise_conv_block.1} parent=39 // pred_check
        %p1198 = pneg %p122
      $region42: #{depthwise_conv_block.1} parent=39 // pred_check_branch
        %1200 = sbr.rel (%p1198) target = $region44
      $region43: #{depthwise_conv_block.1} parent=39 // pred_region
        %s1201 = smul.u32 2, %s21
        %p1202 = scmp.lt.s32.totalorder %s20, 1
        %s1203 = scalar_select %p1202, %s20, 1
        %p1204 = scmp.lt.s32.totalorder %s1201, 1
        %s1205 = scalar_select %p1204, %s1201, 1
        %s1206 = smul.addr %s1203, 64
        %s1207 = sadd.s32 %s1205, %s1206
        %s1208 = smul.addr %s1207, 8
        %s1209 = scalar_lea.vmem %s3, %s1208
      $region44: #{depthwise_conv_block.1} parent=39 // pred_fallthru
        _
    $region40: #{depthwise_conv_block.1} parent=5 // pred_fallthru
      _
  $region6: #{depthwise_conv_block.1} parent=0 // loop_footer
    %s13 = sadd.s32 1, %s9
  $region7: #{depthwise_conv_block.1} parent=0 // loop_footer_branch
    %8 = sbr.rel target = $region3
  $region8: #{depthwise_conv_block.1} parent=0 // loop_exit
    _

</llo_original>
